<compile_context>
chip_gen: v7x
topology: tpu7x:2x2x1
jax: 0.10.0
libtpu: 0.0.40
codegen_flags: <defaults>
</compile_context>

<pallas_src>
import jax
import jax.numpy as jnp
from jax.experimental import pallas as pl
from jax.experimental.pallas import tpu as pltpu

EPS = 1e-6


def _norm_kernel(x_ref, alpha_ref, bias_ref, o_ref):
    x = x_ref[...].astype(jnp.float32)                # (tile_rows, d_model)
    d = x.shape[-1]
    mean = jnp.mean(x, axis=-1, keepdims=True)        # (tile_rows, 1)
    centered = x - mean
    # Unbiased std (Bessel correction), matching torch.std default.
    var = jnp.sum(centered * centered, axis=-1, keepdims=True) / (d - 1)
    std = jnp.sqrt(var)
    # Per-row reciprocal (exact, keeps parity with the divide-based reference);
    # replaces tile_rows*d_model divides with tile_rows reciprocals.
    inv = pl.reciprocal(std + EPS, approx=False)      # (tile_rows, 1)
    alpha = alpha_ref[...]                            # (1, d_model), f32
    bias = bias_ref[...]                              # (1, d_model), f32
    out = alpha * (centered * inv) + bias
    o_ref[...] = out.astype(o_ref.dtype)


def _pick_tile_rows(n_rows, d_model, x_dtype, out_dtype, buffer_budget_bytes):
    """Largest multiple-of-8 row tile whose double-buffered in+out fits budget."""
    in_b = jnp.dtype(x_dtype).itemsize
    out_b = jnp.dtype(out_dtype).itemsize
    bytes_per_row = 2 * d_model * (in_b + out_b)      # 2x for double buffering
    max_rows = max(8, buffer_budget_bytes // bytes_per_row)
    tile = min(int(max_rows), 1024)                   # gains flatten past ~512-1K
    tile -= tile % 8
    tile = max(tile, 8)
    # No point tiling beyond the data itself (rounded up to a sublane multiple).
    rows_rounded = ((n_rows + 7) // 8) * 8
    return min(tile, max(rows_rounded, 8))


def norm(x, alpha, bias, *, tile_rows=None):
    """x: (..., d_model); alpha, bias: (d_model,). Normalizes along dim=-1."""
    orig_shape = x.shape
    d_model = orig_shape[-1]
    # NOTE: d_model == 1 yields nan (division by N-1 == 0), same as torch.std.
    x2 = x.reshape(-1, d_model)
    n_rows = x2.shape[0]

    alpha2 = alpha.reshape(1, d_model).astype(jnp.float32)
    bias2 = bias.reshape(1, d_model).astype(jnp.float32)

    # Per-generation VMEM sizing: v5e/v6e = 128 MiB, v7x = 64 MiB per TC.
    try:
        vmem_cap = int(pltpu.get_tpu_info().vmem_capacity_bytes)
    except Exception:
        vmem_cap = 64 * 1024 * 1024                   # conservative fallback
    buffer_budget = min(vmem_cap // 4, 32 * 1024 * 1024)
    if tile_rows is None:
        tile_rows = _pick_tile_rows(n_rows, d_model, x2.dtype, x.dtype,
                                    buffer_budget)
    vmem_limit = int(min(2 * buffer_budget, vmem_cap - 8 * 1024 * 1024))
    vmem_limit = max(vmem_limit, 16 * 1024 * 1024)

    grid = (pl.cdiv(n_rows, tile_rows),)              # ragged last block OK:
    # rows are independent; OOB reads are garbage but their writes are masked.
    out = pl.pallas_call(
        _norm_kernel,
        out_shape=jax.ShapeDtypeStruct((n_rows, d_model), x.dtype),
        grid_spec=pltpu.PrefetchScalarGridSpec(
            num_scalar_prefetch=0,
            grid=grid,
            in_specs=[
                pl.BlockSpec((tile_rows, d_model), lambda i: (i, 0)),
                pl.BlockSpec((1, d_model), lambda i: (0, 0)),
                pl.BlockSpec((1, d_model), lambda i: (0, 0)),
            ],
            out_specs=pl.BlockSpec((tile_rows, d_model), lambda i: (i, 0)),
        ),
        compiler_params=pltpu.CompilerParams(
            dimension_semantics=("parallel",),        # shards rows across TCs on v7x
            vmem_limit_bytes=vmem_limit,
        ),
    )(x2, alpha2, bias2)

    return out.reshape(orig_shape)


def norm_ref(x, alpha, bias):
    x = x.astype(jnp.float32)
    mean = jnp.mean(x, axis=-1, keepdims=True)
    d = x.shape[-1]
    var = jnp.sum((x - mean) ** 2, axis=-1, keepdims=True) / (d - 1)
    std = jnp.sqrt(var)
    return alpha * (x - mean) / (std + EPS) + bias


if __name__ == "__main__":
    key = jax.random.PRNGKey(0)
    # d_model kept at a multiple of 128 so the output stays lane-dense
    # (unmasked vst); the kernel itself works for any d_model.
    batch, seq, d_model = 2, 8, 128
    x = jax.random.normal(key, (batch, seq, d_model), dtype=jnp.float32)

    # deterministic parameter init, matching nn.Parameter(torch.ones/zeros)
    alpha = jnp.ones((d_model,), dtype=jnp.float32)
    bias = jnp.zeros((d_model,), dtype=jnp.float32)

    out = norm(x, alpha, bias)
    jax.block_until_ready(out)

    ref = norm_ref(x, alpha, bias)
    assert out.shape == x.shape
    assert jnp.max(jnp.abs(out - ref)) < 1e-5

    print("KERNEL_OK")
</pallas_src>

<mosaic_0001>
module attributes {stable_mosaic.version = 11 : i64} {
  func.func @_norm_kernel(%arg0: i32, %arg1: memref<16x128xf32, #tpu.memory_space<vmem>>, %arg2: memref<1x128xf32, #tpu.memory_space<vmem>>, %arg3: memref<1x128xf32, #tpu.memory_space<vmem>>, %arg4: memref<16x128xf32, #tpu.memory_space<vmem>>) attributes {dimension_semantics = [#tpu.dimension_semantics<parallel>], iteration_bounds = array<i64: 1>, scalar_prefetch = 0 : i64, scratch_operands = 0 : i64, tpu.core_type = #tpu.core_type<tc>, window_params = [{transform_indices = @transform_0, window_bounds = array<i64: 16, 128>}, {pipeline_mode = #tpu.pipeline_mode<synchronous>, transform_indices = @transform_1, window_bounds = array<i64: 1, 128>}, {pipeline_mode = #tpu.pipeline_mode<synchronous>, transform_indices = @transform_2, window_bounds = array<i64: 1, 128>}, {transform_indices = @transform_3, window_bounds = array<i64: 16, 128>}]} {
    %c0 = arith.constant 0 : index
    %c0_0 = arith.constant 0 : index
    %0 = vector.load %arg1[%c0, %c0_0] : memref<16x128xf32, #tpu.memory_space<vmem>>, vector<16x128xf32>
    %cst = arith.constant dense<0.000000e+00> : vector<16xf32>
    %1 = vector.multi_reduction <add>, %0, %cst [1] : vector<16x128xf32> to vector<16xf32>
    %2 = vector.shape_cast %1 : vector<16xf32> to vector<16x1xf32>
    %cst_1 = arith.constant 1.280000e+02 : f32
    %3 = vector.broadcast %cst_1 : f32 to vector<16x1xf32>
    %4 = arith.divf %2, %3 : vector<16x1xf32>
    %5 = vector.broadcast %4 : vector<16x1xf32> to vector<16x128xf32>
    %6 = arith.subf %0, %5 : vector<16x128xf32>
    %7 = arith.mulf %6, %6 : vector<16x128xf32>
    %cst_2 = arith.constant dense<0.000000e+00> : vector<16xf32>
    %8 = vector.multi_reduction <add>, %7, %cst_2 [1] : vector<16x128xf32> to vector<16xf32>
    %9 = vector.shape_cast %8 : vector<16xf32> to vector<16x1xf32>
    %cst_3 = arith.constant 1.270000e+02 : f32
    %10 = vector.broadcast %cst_3 : f32 to vector<16x1xf32>
    %11 = arith.divf %9, %10 : vector<16x1xf32>
    %12 = math.sqrt %11 : vector<16x1xf32>
    %cst_4 = arith.constant 9.99999997E-7 : f32
    %13 = vector.broadcast %cst_4 : f32 to vector<16x1xf32>
    %14 = arith.addf %12, %13 : vector<16x1xf32>
    %15 = tpu.reciprocal %14 : vector<16x1xf32> -> vector<16x1xf32>
    %c0_5 = arith.constant 0 : index
    %c0_6 = arith.constant 0 : index
    %16 = vector.load %arg2[%c0_5, %c0_6] : memref<1x128xf32, #tpu.memory_space<vmem>>, vector<1x128xf32>
    %c0_7 = arith.constant 0 : index
    %c0_8 = arith.constant 0 : index
    %17 = vector.load %arg3[%c0_7, %c0_8] : memref<1x128xf32, #tpu.memory_space<vmem>>, vector<1x128xf32>
    %18 = vector.broadcast %15 : vector<16x1xf32> to vector<16x128xf32>
    %19 = arith.mulf %6, %18 : vector<16x128xf32>
    %20 = vector.broadcast %16 : vector<1x128xf32> to vector<16x128xf32>
    %21 = arith.mulf %20, %19 : vector<16x128xf32>
    %22 = vector.broadcast %17 : vector<1x128xf32> to vector<16x128xf32>
    %23 = arith.addf %21, %22 : vector<16x128xf32>
    %c0_9 = arith.constant 0 : index
    %c0_10 = arith.constant 0 : index
    %24 = vector.load %arg4[%c0_9, %c0_10] : memref<16x128xf32, #tpu.memory_space<vmem>>, vector<16x128xf32>
    tpu.vector_store %arg4[%c0_9, %c0_10], %23 {strides = array<i32>} : memref<16x128xf32, #tpu.memory_space<vmem>>, vector<16x128xf32>,
    return
  }
  func.func @transform_0(%arg0: i32) -> (i32, i32) {
    %c0_i32 = arith.constant 0 : i32
    %c0_i32_0 = arith.constant 0 : i32
    return %arg0, %c0_i32 : i32, i32
  }
  func.func @transform_1(%arg0: i32) -> (i32, i32) {
    %c0_i32 = arith.constant 0 : i32
    %c0_i32_0 = arith.constant 0 : i32
    %c0_i32_1 = arith.constant 0 : i32
    return %c0_i32, %c0_i32_0 : i32, i32
  }
  func.func @transform_2(%arg0: i32) -> (i32, i32) {
    %c0_i32 = arith.constant 0 : i32
    %c0_i32_0 = arith.constant 0 : i32
    %c0_i32_1 = arith.constant 0 : i32
    return %c0_i32, %c0_i32_0 : i32, i32
  }
  func.func @transform_3(%arg0: i32) -> (i32, i32) {
    %c0_i32 = arith.constant 0 : i32
    %c0_i32_0 = arith.constant 0 : i32
    return %arg0, %c0_i32 : i32, i32
  }
}

</mosaic_0001>

<llo_original>
// kernel: tpu_custom_call.1
$region0: #{tpu_custom_call.1}
  #allocation0 [shape = 'u32[]', space=smem, size = 0x4, offset = 0x4, fixed_abs, tag = 'smem constant byte address 0x4 - core index']
  #allocation1 [shape = 'u32[144,128]{1,0:T(1,128)}', space=vmem, size = 0x12000, scoped, tag = 'internal scratch']
  %s0 = inlined_call_operand.hbm [shape: f32[16,128], index: 0, kind: input, shape index: {}]
  %s1 = inlined_call_operand.vmem [shape: f32[1,128], index: 1, kind: input, shape index: {}]
  %s2 = inlined_call_operand.vmem [shape: f32[1,128], index: 2, kind: input, shape index: {}]
  %s3 = inlined_call_operand.hbm [shape: f32[16,128], index: 3, kind: output, shape index: {}]
  %s4 = sld [smem:[#allocation0]]
  $region26: #{tpu_custom_call.1} parent=0
    _
  %s6 = ssub.s32 1, %s4
  %s7 = scalar_select 0, %s6, %s4
  $region1: #{tpu_custom_call.1} parent=0
    #allocation2 [shape = 'u8[8192]{0}', space=vmem, size = 0x2000, scoped, tag = 'input window, operand 0, single buffered']
    #allocation3 [shape = 's32[1]{0}', space=sflag, size = 0x4, scoped, tag = 'scoped memory for tpu_custom_call.1']
    #allocation4 [shape = 's32[1]{0}', space=sflag, size = 0x4, scoped, tag = 'scoped memory for tpu_custom_call.1']
    #allocation5 [shape = 'u8[8192]{0}', space=vmem, size = 0x2000, scoped, tag = 'output window, operand 0, single buffered']
    %8 = vsyncpa [#allocation3], 0
    %9 = vsyncpa [#allocation4], 0
    // Predicated region
    $region2: #{tpu_custom_call.1} parent=1 // pred_check
      _
    $region3: #{tpu_custom_call.1} parent=1 // pred_check_branch
      %11 = sbr.rel (0) target = $region5
    $region4: #{tpu_custom_call.1} parent=1 // pred_region
      %s13 = ssub.s32 256, 256
      %14 = vsyncadd [#allocation3], %s13
      %s15 = sshll.u32 [#allocation2], 4
      %s16 = int_to_ptr.vmem [resolvable:$true] %s15
      %21 = dma.hbm_to_vmem [thread:$0]  %s0, 256, %s16, [#allocation3], 128, 128, 8
    $region5: #{tpu_custom_call.1} parent=1 // pred_fallthru
      _
    // Predicated region
    $region6: #{tpu_custom_call.1} parent=1 // pred_check
      _
    $region7: #{tpu_custom_call.1} parent=1 // pred_check_branch
      %23 = sbr.rel (0) target = $region9
    $region8: #{tpu_custom_call.1} parent=1 // pred_region
      _
    $region9: #{tpu_custom_call.1} parent=1 // pred_fallthru
      _
    // Predicated region
    $region10: #{tpu_custom_call.1} parent=1 // pred_check
      _
    $region11: #{tpu_custom_call.1} parent=1 // pred_check_branch
      %25 = sbr.rel (0) target = $region13
    $region12: #{tpu_custom_call.1} parent=1 // pred_region
      _
    $region13: #{tpu_custom_call.1} parent=1 // pred_fallthru
      _
    // Predicated region
    $region14: #{tpu_custom_call.1} parent=1 // pred_check
      _
    $region15: #{tpu_custom_call.1} parent=1 // pred_check_branch
      %27 = sbr.rel (0) target = $region17
    $region16: #{tpu_custom_call.1} parent=1 // pred_region
      %28 = dma.done [#allocation3], 256
    $region17: #{tpu_custom_call.1} parent=1 // pred_fallthru
      _
    %v29 = vld [vmem:[#allocation2] sm:$0xff]
    %v30 = vld [vmem:[#allocation2 + $0x8] sm:$0xff]
    %31 = vadd.xlane.f32.xlu0 %v29
    %v32 = vpop.xlane.xlu0 %31
    %33 = vadd.xlane.f32.xlu0 %v30
    %v34 = vpop.xlane.xlu0 %33
    %v35 = vrcp.pop 128.0
    %v36 = vmul.f32 %v32, %v35
    %v37 = vmul.f32 %v34, %v35
    %v38 = vsub.f32 %v29, %v36
    %v39 = vsub.f32 %v30, %v37
    %v40 = vmul.f32 %v38, %v38
    %v41 = vmul.f32 %v39, %v39
    %42 = vadd.xlane.f32.xlu0 %v40
    %v43 = vpop.xlane.xlu0 %42
    %44 = vadd.xlane.f32.xlu0 %v41
    %v45 = vpop.xlane.xlu0 %44
    %v46 = vrcp.pop 127.0
    %v47 = vmul.f32 %v43, %v46
    %v48 = vmul.f32 %v45, %v46
    %v49 = vrsqrt.pop %v47
    %v50 = vmul.f32 %v47, %v49
    %vm51 = vcmp.eq.f32.partialorder %v47, inf
    %v52 = vsel %vm51, %v47, %v50
    %vm53 = vcmp.eq.f32.partialorder %v47, 0.0
    %v54 = vand.u32 %v47, 2147483648
    %v55 = vsel %vm53, %v54, %v52
    %v56 = vrsqrt.pop %v48
    %v57 = vmul.f32 %v48, %v56
    %vm58 = vcmp.eq.f32.partialorder %v48, inf
    %v59 = vsel %vm58, %v48, %v57
    %vm60 = vcmp.eq.f32.partialorder %v48, 0.0
    %v61 = vand.u32 %v48, 2147483648
    %v62 = vsel %vm60, %v61, %v59
    %v63 = vadd.f32 %v55, 1e-06
    %v64 = vadd.f32 %v62, 1e-06
    %v65 = vrcp.pop %v63
    %v66 = vrcp.pop %v64
    %v67 = vld [vmem:[%s1] sm:$0x1]
    %v68 = vld [vmem:[%s2] sm:$0x1]
    %v69 = vmul.f32 %v38, %v65
    %v70 = vmul.f32 %v39, %v66
    %v72 = vlaneseq
    %v73 = vshrl.u32 %v72, 7
    %v74 = vsub.s32 0, %v73
    %v75 = vrot.slane %v67, %v74
    %v77 = vmul.f32 %v75, %v69
    %v78 = vmul.f32 %v75, %v70
    %v80 = vlaneseq
    %v81 = vshrl.u32 %v80, 7
    %v82 = vsub.s32 0, %v81
    %v83 = vrot.slane %v68, %v82
    %v85 = vadd.f32 %v77, %v83
    %v86 = vadd.f32 %v78, %v83
    %87 = vst [vmem:[#allocation5] sm:$0xff] %v85
    %88 = vst [vmem:[#allocation5 + $0x8] sm:$0xff] %v86
    // Predicated region
    $region18: #{tpu_custom_call.1} parent=1 // pred_check
      _
    $region19: #{tpu_custom_call.1} parent=1 // pred_check_branch
      %90 = sbr.rel (0) target = $region21
    $region20: #{tpu_custom_call.1} parent=1 // pred_region
      %s92 = ssub.s32 256, 256
      %93 = vsyncadd [#allocation4], %s92
      %s94 = sshll.u32 [#allocation5], 4
      %s95 = int_to_ptr.vmem [resolvable:$true] %s94
      %100 = dma.vmem_to_hbm [thread:$0]  %s95, 256, %s3, [#allocation4], 128, 128, 8
    $region21: #{tpu_custom_call.1} parent=1 // pred_fallthru
      _
    // Predicated region
    $region22: #{tpu_custom_call.1} parent=1 // pred_check
      _
    $region23: #{tpu_custom_call.1} parent=1 // pred_check_branch
      %102 = sbr.rel (0) target = $region25
    $region24: #{tpu_custom_call.1} parent=1 // pred_region
      %103 = dma.done [#allocation4], 256
    $region25: #{tpu_custom_call.1} parent=1 // pred_fallthru
      _
    %104 = vsyncpa [#allocation3], 1
    %105 = vsyncpa [#allocation4], 1

</llo_original>
